<compile_context>
chip_gen: v6e
topology: v6e:2x2x1
jax: 0.10.0
libtpu: 0.0.40
codegen_flags: <defaults>
</compile_context>

<pallas_src>
import functools

import jax
import jax.numpy as jnp
from jax.experimental import pallas as pl
from jax.experimental.pallas import tpu as pltpu


def _round_up(n, m):
    return ((n + m - 1) // m) * m


def _rnn_kernel(x_ref, wih_ref, whh_ref, b_ref, wfc_ref, bfc_ref, out_ref,
                u_ref, *, T, Bp):
    """RNN recurrence with hoisted input projection + fused fc/tanh epilogue.

    x_ref:   (T*Bp, Fp)  bf16  time-major input, flattened over (time, padded batch)
    wih_ref: (Fp, Hp)    bf16  input->hidden weight (transposed, zero padded)
    whh_ref: (Hp, Hp)    bf16  hidden->hidden weight (transposed, zero padded)
    b_ref:   (1, Hp)     f32   b_ih + b_hh (zero padded)
    wfc_ref: (Hp, Cp)    bf16  fc weight (transposed, zero padded)
    bfc_ref: (1, Cp)     f32   fc bias (zero padded)
    out_ref: (Bp, Cp)    f32
    u_ref:   (T*Bp, Hp)  f32   VMEM scratch for the hoisted projection
    """
    # Hoisted input projection: ONE bf16 (T*Bp, Fp) @ (Fp, Hp) matmul for all
    # timesteps (f32 accumulation), bias folded in exactly once, parked in a
    # VMEM scratch so the recurrence re-loads one (Bp, Hp) slice per step.
    u_ref[...] = (
        jnp.dot(x_ref[...], wih_ref[...], preferred_element_type=jnp.float32)
        + b_ref[...]
    )

    whh = whh_ref[...]  # (Hp, Hp) bf16: 8 vregs at Hp=128, kept resident

    # t = 0: h_0 == 0, so the recurrent matmul is skipped entirely.
    h = jnp.tanh(u_ref[pl.ds(0, Bp), :])  # f32 carry

    # t = 1 .. T-1, fully unrolled (T is small & static); slices are static and
    # sublane-aligned (Bp is a multiple of 8).  Per-step serial chain:
    # cast(h)->bf16 MXU dot (f32 acc) -> VPU add of u_t -> EUP tanh.
    for t in range(1, T):
        u_t = u_ref[pl.ds(t * Bp, Bp), :]
        h = jnp.tanh(
            u_t
            + jnp.dot(h.astype(jnp.bfloat16), whh,
                      preferred_element_type=jnp.float32)
        )

    # Fused epilogue: fc + tanh directly on the carried h, single lane-dense store.
    out_ref[...] = jnp.tanh(
        jnp.dot(h.astype(jnp.bfloat16), wfc_ref[...],
                preferred_element_type=jnp.float32)
        + bfc_ref[...]
    )


def prepare_params(w_ih, w_hh, b_ih, b_hh, w_fc, b_fc):
    """One-time parameter prep (pad / transpose / bf16 cast).

    Hoisted out of the per-call path so the forward pass only touches x.
    w_ih: (H, F)   w_hh: (H, H)   b_ih, b_hh: (H,)   w_fc: (C, H)   b_fc: (C,)
    """
    H, F = w_ih.shape
    C = w_fc.shape[0]
    Fp = _round_up(F, 128)
    Hp = _round_up(H, 128)
    Cp = _round_up(C, 128)

    f32 = jnp.float32
    wih_p = jnp.pad(w_ih.T.astype(f32), ((0, Fp - F), (0, Hp - H))).astype(jnp.bfloat16)
    whh_p = jnp.pad(w_hh.T.astype(f32), ((0, Hp - H), (0, Hp - H))).astype(jnp.bfloat16)
    b_p = jnp.pad((b_ih + b_hh).astype(f32), (0, Hp - H)).reshape(1, Hp)
    wfc_p = jnp.pad(w_fc.T.astype(f32), ((0, Hp - H), (0, Cp - C))).astype(jnp.bfloat16)
    bfc_p = jnp.pad(b_fc.astype(f32), (0, Cp - C)).reshape(1, Cp)

    return {
        "wih": wih_p, "whh": whh_p, "b": b_p, "wfc": wfc_p, "bfc": bfc_p,
        "dims": (F, H, C, Fp, Hp, Cp),
    }


def rnn_forward(x, params, *, time_step, in_feature):
    """Pallas implementation of Model.forward (RNN + Linear + tanh).

    x: any shape that views to (-1, time_step, in_feature)  (batch_first)
    returns (B, C) float32
    """
    F, H, C, Fp, Hp, Cp = params["dims"]
    x = x.reshape(-1, time_step, in_feature)
    B, T, _ = x.shape
    Bp = _round_up(B, 8)

    # Minimal per-call x prep: time-major, zero-pad to (T, Bp, Fp) (exact for
    # this recurrence), flatten (free bitcast on a contiguous array), bf16 cast
    # for the MXU.  XLA fuses these into a single surrounding op.
    x_tm = jnp.transpose(x.astype(jnp.float32), (1, 0, 2))       # (T, B, F)
    x_tm = jnp.pad(x_tm, ((0, 0), (0, Bp - B), (0, Fp - F)))     # (T, Bp, Fp)
    x2d = x_tm.reshape(T * Bp, Fp).astype(jnp.bfloat16)          # (T*Bp, Fp)

    vmem = pl.BlockSpec(memory_space=pltpu.MemorySpace.VMEM)
    kernel = functools.partial(_rnn_kernel, T=T, Bp=Bp)

    out_p = pl.pallas_call(
        kernel,
        out_shape=jax.ShapeDtypeStruct((Bp, Cp), jnp.float32),
        in_specs=[vmem] * 6,
        out_specs=vmem,
        scratch_shapes=[pltpu.VMEM((T * Bp, Hp), jnp.float32)],
    )(x2d, params["wih"], params["whh"], params["b"], params["wfc"], params["bfc"])

    return out_p[:B, :C]


def _reference(x, w_ih, w_hh, b_ih, b_hh, w_fc, b_fc, *, time_step, in_feature):
    """Pure-JAX f32 reference mirroring torch.nn.RNN + Linear + tanh."""
    x = x.reshape(-1, time_step, in_feature).astype(jnp.float32)
    B, T, _ = x.shape
    h = jnp.zeros((B, w_ih.shape[0]), jnp.float32)
    for t in range(T):
        h = jnp.tanh(x[:, t, :] @ w_ih.T + b_ih + h @ w_hh.T + b_hh)
    return jnp.tanh(h @ w_fc.T + b_fc)


if __name__ == "__main__":
    # Model(in_feature=16, hidden_feature=32, output_class=10, time_step=8), batch=4
    in_feature, hidden_feature, output_class, time_step = 16, 32, 10, 8
    batch = 4

    key = jax.random.PRNGKey(0)
    ks = jax.random.split(key, 7)
    s = 1.0 / jnp.sqrt(hidden_feature)
    x = jax.random.normal(ks[0], (batch, time_step, in_feature), jnp.float32)
    w_ih = jax.random.uniform(ks[1], (hidden_feature, in_feature), jnp.float32, -s, s)
    w_hh = jax.random.uniform(ks[2], (hidden_feature, hidden_feature), jnp.float32, -s, s)
    b_ih = jax.random.uniform(ks[3], (hidden_feature,), jnp.float32, -s, s)
    b_hh = jax.random.uniform(ks[4], (hidden_feature,), jnp.float32, -s, s)
    w_fc = jax.random.uniform(ks[5], (output_class, hidden_feature), jnp.float32, -s, s)
    b_fc = jax.random.uniform(ks[6], (output_class,), jnp.float32, -s, s)

    # Parameter prep happens once (hoisted out of the per-call path).
    params = prepare_params(w_ih, w_hh, b_ih, b_hh, w_fc, b_fc)

    out = rnn_forward(x, params, time_step=time_step, in_feature=in_feature)
    out = jax.block_until_ready(out)

    ref = _reference(x, w_ih, w_hh, b_ih, b_hh, w_fc, b_fc,
                     time_step=time_step, in_feature=in_feature)
    assert out.shape == (batch, output_class)
    # bf16 MXU operands (f32 accumulation) -> tanh-bounded outputs, ~1e-3 error.
    assert jnp.allclose(out, ref, atol=2e-2, rtol=2e-2), float(jnp.max(jnp.abs(out - ref)))

    print("KERNEL_OK")
</pallas_src>

<mosaic_0001>
module attributes {stable_mosaic.version = 11 : i64} {
  func.func @_rnn_kernel(%arg0: memref<64x128xbf16, #tpu.memory_space<vmem>>, %arg1: memref<128x128xbf16, #tpu.memory_space<vmem>>, %arg2: memref<128x128xbf16, #tpu.memory_space<vmem>>, %arg3: memref<1x128xf32, #tpu.memory_space<vmem>>, %arg4: memref<128x128xbf16, #tpu.memory_space<vmem>>, %arg5: memref<1x128xf32, #tpu.memory_space<vmem>>, %arg6: memref<8x128xf32, #tpu.memory_space<vmem>>, %arg7: memref<64x128xf32, #tpu.memory_space<vmem>>) attributes {dimension_semantics = [], scalar_prefetch = 0 : i64, scratch_operands = 1 : i64, tpu.core_type = #tpu.core_type<tc>} {
    %c0 = arith.constant 0 : index
    %c0_0 = arith.constant 0 : index
    %0 = vector.load %arg0[%c0, %c0_0] : memref<64x128xbf16, #tpu.memory_space<vmem>>, vector<64x128xbf16>
    %c0_1 = arith.constant 0 : index
    %c0_2 = arith.constant 0 : index
    %1 = vector.load %arg1[%c0_1, %c0_2] : memref<128x128xbf16, #tpu.memory_space<vmem>>, vector<128x128xbf16>
    %cst = arith.constant dense<0.000000e+00> : vector<64x128xf32>
    %2 = tpu.matmul %0, %1, %cst {dimension_numbers = #tpu.dot_dimension_numbers<[1], [0], [0], [1], [0, 0, 1, 1], [], []>} : vector<64x128xbf16>, vector<128x128xbf16>, vector<64x128xf32> -> vector<64x128xf32>
    %c0_3 = arith.constant 0 : index
    %c0_4 = arith.constant 0 : index
    %3 = vector.load %arg3[%c0_3, %c0_4] : memref<1x128xf32, #tpu.memory_space<vmem>>, vector<1x128xf32>
    %4 = vector.broadcast %3 : vector<1x128xf32> to vector<64x128xf32>
    %5 = arith.addf %2, %4 : vector<64x128xf32>
    %c0_5 = arith.constant 0 : index
    %c0_6 = arith.constant 0 : index
    %6 = vector.load %arg7[%c0_5, %c0_6] : memref<64x128xf32, #tpu.memory_space<vmem>>, vector<64x128xf32>
    tpu.vector_store %arg7[%c0_5, %c0_6], %5 {strides = array<i32>} : memref<64x128xf32, #tpu.memory_space<vmem>>, vector<64x128xf32>,
    %c0_7 = arith.constant 0 : index
    %c0_8 = arith.constant 0 : index
    %7 = vector.load %arg2[%c0_7, %c0_8] : memref<128x128xbf16, #tpu.memory_space<vmem>>, vector<128x128xbf16>
    %c0_9 = arith.constant 0 : index
    %c0_10 = arith.constant 0 : index
    %8 = vector.load %arg7[%c0_9, %c0_10] : memref<64x128xf32, #tpu.memory_space<vmem>>, vector<8x128xf32>
    %9 = math.tanh %8 : vector<8x128xf32>
    %c8 = arith.constant 8 : index
    %c0_11 = arith.constant 0 : index
    %10 = vector.load %arg7[%c8, %c0_11] : memref<64x128xf32, #tpu.memory_space<vmem>>, vector<8x128xf32>
    %11 = arith.truncf %9 : vector<8x128xf32> to vector<8x128xbf16>
    %cst_12 = arith.constant dense<0.000000e+00> : vector<8x128xf32>
    %12 = tpu.matmul %11, %7, %cst_12 {dimension_numbers = #tpu.dot_dimension_numbers<[1], [0], [0], [1], [0, 0, 1, 1], [], []>} : vector<8x128xbf16>, vector<128x128xbf16>, vector<8x128xf32> -> vector<8x128xf32>
    %13 = arith.addf %10, %12 : vector<8x128xf32>
    %14 = math.tanh %13 : vector<8x128xf32>
    %c16 = arith.constant 16 : index
    %c0_13 = arith.constant 0 : index
    %15 = vector.load %arg7[%c16, %c0_13] : memref<64x128xf32, #tpu.memory_space<vmem>>, vector<8x128xf32>
    %16 = arith.truncf %14 : vector<8x128xf32> to vector<8x128xbf16>
    %cst_14 = arith.constant dense<0.000000e+00> : vector<8x128xf32>
    %17 = tpu.matmul %16, %7, %cst_14 {dimension_numbers = #tpu.dot_dimension_numbers<[1], [0], [0], [1], [0, 0, 1, 1], [], []>} : vector<8x128xbf16>, vector<128x128xbf16>, vector<8x128xf32> -> vector<8x128xf32>
    %18 = arith.addf %15, %17 : vector<8x128xf32>
    %19 = math.tanh %18 : vector<8x128xf32>
    %c24 = arith.constant 24 : index
    %c0_15 = arith.constant 0 : index
    %20 = vector.load %arg7[%c24, %c0_15] : memref<64x128xf32, #tpu.memory_space<vmem>>, vector<8x128xf32>
    %21 = arith.truncf %19 : vector<8x128xf32> to vector<8x128xbf16>
    %cst_16 = arith.constant dense<0.000000e+00> : vector<8x128xf32>
    %22 = tpu.matmul %21, %7, %cst_16 {dimension_numbers = #tpu.dot_dimension_numbers<[1], [0], [0], [1], [0, 0, 1, 1], [], []>} : vector<8x128xbf16>, vector<128x128xbf16>, vector<8x128xf32> -> vector<8x128xf32>
    %23 = arith.addf %20, %22 : vector<8x128xf32>
    %24 = math.tanh %23 : vector<8x128xf32>
    %c32 = arith.constant 32 : index
    %c0_17 = arith.constant 0 : index
    %25 = vector.load %arg7[%c32, %c0_17] : memref<64x128xf32, #tpu.memory_space<vmem>>, vector<8x128xf32>
    %26 = arith.truncf %24 : vector<8x128xf32> to vector<8x128xbf16>
    %cst_18 = arith.constant dense<0.000000e+00> : vector<8x128xf32>
    %27 = tpu.matmul %26, %7, %cst_18 {dimension_numbers = #tpu.dot_dimension_numbers<[1], [0], [0], [1], [0, 0, 1, 1], [], []>} : vector<8x128xbf16>, vector<128x128xbf16>, vector<8x128xf32> -> vector<8x128xf32>
    %28 = arith.addf %25, %27 : vector<8x128xf32>
    %29 = math.tanh %28 : vector<8x128xf32>
    %c40 = arith.constant 40 : index
    %c0_19 = arith.constant 0 : index
    %30 = vector.load %arg7[%c40, %c0_19] : memref<64x128xf32, #tpu.memory_space<vmem>>, vector<8x128xf32>
    %31 = arith.truncf %29 : vector<8x128xf32> to vector<8x128xbf16>
    %cst_20 = arith.constant dense<0.000000e+00> : vector<8x128xf32>
    %32 = tpu.matmul %31, %7, %cst_20 {dimension_numbers = #tpu.dot_dimension_numbers<[1], [0], [0], [1], [0, 0, 1, 1], [], []>} : vector<8x128xbf16>, vector<128x128xbf16>, vector<8x128xf32> -> vector<8x128xf32>
    %33 = arith.addf %30, %32 : vector<8x128xf32>
    %34 = math.tanh %33 : vector<8x128xf32>
    %c48 = arith.constant 48 : index
    %c0_21 = arith.constant 0 : index
    %35 = vector.load %arg7[%c48, %c0_21] : memref<64x128xf32, #tpu.memory_space<vmem>>, vector<8x128xf32>
    %36 = arith.truncf %34 : vector<8x128xf32> to vector<8x128xbf16>
    %cst_22 = arith.constant dense<0.000000e+00> : vector<8x128xf32>
    %37 = tpu.matmul %36, %7, %cst_22 {dimension_numbers = #tpu.dot_dimension_numbers<[1], [0], [0], [1], [0, 0, 1, 1], [], []>} : vector<8x128xbf16>, vector<128x128xbf16>, vector<8x128xf32> -> vector<8x128xf32>
    %38 = arith.addf %35, %37 : vector<8x128xf32>
    %39 = math.tanh %38 : vector<8x128xf32>
    %c56 = arith.constant 56 : index
    %c0_23 = arith.constant 0 : index
    %40 = vector.load %arg7[%c56, %c0_23] : memref<64x128xf32, #tpu.memory_space<vmem>>, vector<8x128xf32>
    %41 = arith.truncf %39 : vector<8x128xf32> to vector<8x128xbf16>
    %cst_24 = arith.constant dense<0.000000e+00> : vector<8x128xf32>
    %42 = tpu.matmul %41, %7, %cst_24 {dimension_numbers = #tpu.dot_dimension_numbers<[1], [0], [0], [1], [0, 0, 1, 1], [], []>} : vector<8x128xbf16>, vector<128x128xbf16>, vector<8x128xf32> -> vector<8x128xf32>
    %43 = arith.addf %40, %42 : vector<8x128xf32>
    %44 = math.tanh %43 : vector<8x128xf32>
    %45 = arith.truncf %44 : vector<8x128xf32> to vector<8x128xbf16>
    %c0_25 = arith.constant 0 : index
    %c0_26 = arith.constant 0 : index
    %46 = vector.load %arg4[%c0_25, %c0_26] : memref<128x128xbf16, #tpu.memory_space<vmem>>, vector<128x128xbf16>
    %cst_27 = arith.constant dense<0.000000e+00> : vector<8x128xf32>
    %47 = tpu.matmul %45, %46, %cst_27 {dimension_numbers = #tpu.dot_dimension_numbers<[1], [0], [0], [1], [0, 0, 1, 1], [], []>} : vector<8x128xbf16>, vector<128x128xbf16>, vector<8x128xf32> -> vector<8x128xf32>
    %c0_28 = arith.constant 0 : index
    %c0_29 = arith.constant 0 : index
    %48 = vector.load %arg5[%c0_28, %c0_29] : memref<1x128xf32, #tpu.memory_space<vmem>>, vector<1x128xf32>
    %49 = vector.broadcast %48 : vector<1x128xf32> to vector<8x128xf32>
    %50 = arith.addf %47, %49 : vector<8x128xf32>
    %51 = math.tanh %50 : vector<8x128xf32>
    %c0_30 = arith.constant 0 : index
    %c0_31 = arith.constant 0 : index
    %52 = vector.load %arg6[%c0_30, %c0_31] : memref<8x128xf32, #tpu.memory_space<vmem>>, vector<8x128xf32>
    tpu.vector_store %arg6[%c0_30, %c0_31], %51 {strides = array<i32>} : memref<8x128xf32, #tpu.memory_space<vmem>>, vector<8x128xf32>,
    return
  }
}

</mosaic_0001>

<llo_original>
// kernel: tpu_custom_call.1
$region0: #{tpu_custom_call.1}
  #allocation0 [shape = 'u32[]', space=smem, size = 0x4, offset = 0x4, fixed_abs, tag = 'smem constant byte address 0x4 - core index']
  #allocation1 [shape = 'u32[144,128]{1,0:T(1,128)}', space=vmem, size = 0x12000, scoped, tag = 'internal scratch']
  #allocation2 [shape = 'f32[64,128]{1,0:T(8,128)}', space=vmem, size = 0x8000, scoped, tag = 'scratch operand']
  %s0 = inlined_call_operand.hbm [shape: bf16[64,128], index: 0, kind: input, shape index: {}]
  %s1 = inlined_call_operand.hbm [shape: bf16[128,128], index: 1, kind: input, shape index: {}]
  %s2 = inlined_call_operand.hbm [shape: bf16[128,128], index: 2, kind: input, shape index: {}]
  %s3 = inlined_call_operand.vmem [shape: f32[1,128], index: 3, kind: input, shape index: {}]
  %s4 = inlined_call_operand.hbm [shape: bf16[128,128], index: 4, kind: input, shape index: {}]
  %s5 = inlined_call_operand.vmem [shape: f32[1,128], index: 5, kind: input, shape index: {}]
  %s6 = inlined_call_operand.hbm [shape: f32[8,128], index: 6, kind: output, shape index: {}]
  %s7 = sld [smem:[#allocation0]]
  $region50: #{tpu_custom_call.1} parent=0
    _
  %s9 = ssub.s32 1, %s7
  %s10 = scalar_select 0, %s9, %s7
  $region1: #{tpu_custom_call.1} parent=0
    #allocation3 [shape = 'u8[16384]{0}', space=vmem, size = 0x4000, scoped, tag = 'input window, operand 0, single buffered']
    #allocation4 [shape = 's32[1]{0}', space=sflag, size = 0x4, scoped, tag = 'scoped memory for tpu_custom_call.1']
    #allocation5 [shape = 's32[1]{0}', space=sflag, size = 0x4, scoped, tag = 'scoped memory for tpu_custom_call.1']
    #allocation6 [shape = 'u8[32768]{0}', space=vmem, size = 0x8000, scoped, tag = 'input window, operand 1, single buffered']
    #allocation7 [shape = 's32[1]{0}', space=sflag, size = 0x4, scoped, tag = 'scoped memory for tpu_custom_call.1']
    #allocation8 [shape = 'u8[32768]{0}', space=vmem, size = 0x8000, scoped, tag = 'input window, operand 2, single buffered']
    #allocation9 [shape = 'u8[32768]{0}', space=vmem, size = 0x8000, scoped, tag = 'input window, operand 4, single buffered']
    #allocation10 [shape = 's32[1]{0}', space=sflag, size = 0x4, scoped, tag = 'scoped memory for tpu_custom_call.1']
    #allocation11 [shape = 'u8[4096]{0}', space=vmem, size = 0x1000, scoped, tag = 'output window, operand 0, single buffered']
    %11 = vsyncpa [#allocation4], 0
    %12 = vsyncpa [#allocation7], 0
    %13 = vsyncpa [#allocation10], 0
    %14 = vsyncpa [#allocation5], 0
    // Predicated region
    $region2: #{tpu_custom_call.1} parent=1 // pred_check
      _
    $region3: #{tpu_custom_call.1} parent=1 // pred_check_branch
      %16 = sbr.rel (0) target = $region5
    $region4: #{tpu_custom_call.1} parent=1 // pred_region
      %s18 = ssub.s32 512, 512
      %19 = vsyncadd [#allocation4], %s18
      %s20 = sshll.u32 [#allocation3], 4
      %s21 = int_to_ptr.vmem [resolvable:$true] %s20
      %26 = dma.hbm_to_vmem [thread:$0]  %s0, 512, %s21, [#allocation4], 64, 64, 4
    $region5: #{tpu_custom_call.1} parent=1 // pred_fallthru
      _
    // Predicated region
    $region6: #{tpu_custom_call.1} parent=1 // pred_check
      _
    $region7: #{tpu_custom_call.1} parent=1 // pred_check_branch
      %28 = sbr.rel (0) target = $region9
    $region8: #{tpu_custom_call.1} parent=1 // pred_region
      %s30 = ssub.s32 1024, 1024
      %31 = vsyncadd [#allocation7], %s30
      %s32 = sshll.u32 [#allocation6], 4
      %s33 = int_to_ptr.vmem [resolvable:$true] %s32
      %38 = dma.hbm_to_vmem [thread:$0]  %s1, 1024, %s33, [#allocation7], 64, 64, 4
    $region9: #{tpu_custom_call.1} parent=1 // pred_fallthru
      _
    // Predicated region
    $region10: #{tpu_custom_call.1} parent=1 // pred_check
      _
    $region11: #{tpu_custom_call.1} parent=1 // pred_check_branch
      %40 = sbr.rel (0) target = $region13
    $region12: #{tpu_custom_call.1} parent=1 // pred_region
      %s42 = ssub.s32 1024, 1024
      %43 = vsyncadd [#allocation7], %s42
      %s44 = sshll.u32 [#allocation8], 4
      %s45 = int_to_ptr.vmem [resolvable:$true] %s44
      %50 = dma.hbm_to_vmem [thread:$0]  %s2, 1024, %s45, [#allocation7], 64, 64, 4
    $region13: #{tpu_custom_call.1} parent=1 // pred_fallthru
      _
    // Predicated region
    $region14: #{tpu_custom_call.1} parent=1 // pred_check
      _
    $region15: #{tpu_custom_call.1} parent=1 // pred_check_branch
      %52 = sbr.rel (0) target = $region17
    $region16: #{tpu_custom_call.1} parent=1 // pred_region
      _
    $region17: #{tpu_custom_call.1} parent=1 // pred_fallthru
      _
    // Predicated region
    $region18: #{tpu_custom_call.1} parent=1 // pred_check
      _
    $region19: #{tpu_custom_call.1} parent=1 // pred_check_branch
      %54 = sbr.rel (0) target = $region21
    $region20: #{tpu_custom_call.1} parent=1 // pred_region
      %s56 = ssub.s32 1024, 1024
      %57 = vsyncadd [#allocation10], %s56
      %s58 = sshll.u32 [#allocation9], 4
      %s59 = int_to_ptr.vmem [resolvable:$true] %s58
      %64 = dma.hbm_to_vmem [thread:$0]  %s4, 1024, %s59, [#allocation10], 64, 64, 4
    $region21: #{tpu_custom_call.1} parent=1 // pred_fallthru
      _
    // Predicated region
    $region22: #{tpu_custom_call.1} parent=1 // pred_check
      _
    $region23: #{tpu_custom_call.1} parent=1 // pred_check_branch
      %66 = sbr.rel (0) target = $region25
    $region24: #{tpu_custom_call.1} parent=1 // pred_region
      _
    $region25: #{tpu_custom_call.1} parent=1 // pred_fallthru
      _
    // Predicated region
    $region26: #{tpu_custom_call.1} parent=1 // pred_check
      _
    $region27: #{tpu_custom_call.1} parent=1 // pred_check_branch
      %68 = sbr.rel (0) target = $region29
    $region28: #{tpu_custom_call.1} parent=1 // pred_region
      %69 = dma.done [#allocation4], 512
    $region29: #{tpu_custom_call.1} parent=1 // pred_fallthru
      _
    // Predicated region
    $region30: #{tpu_custom_call.1} parent=1 // pred_check
      _
    $region31: #{tpu_custom_call.1} parent=1 // pred_check_branch
      %71 = sbr.rel (0) target = $region33
    $region32: #{tpu_custom_call.1} parent=1 // pred_region
      %72 = dma.done [#allocation7], 1024
    $region33: #{tpu_custom_call.1} parent=1 // pred_fallthru
      _
    // Predicated region
    $region34: #{tpu_custom_call.1} parent=1 // pred_check
      _
    $region35: #{tpu_custom_call.1} parent=1 // pred_check_branch
      %74 = sbr.rel (0) target = $region37
    $region36: #{tpu_custom_call.1} parent=1 // pred_region
      %75 = dma.done [#allocation7], 1024
    $region37: #{tpu_custom_call.1} parent=1 // pred_fallthru
      _
    // Predicated region
    $region38: #{tpu_custom_call.1} parent=1 // pred_check
      _
    $region39: #{tpu_custom_call.1} parent=1 // pred_check_branch
      %77 = sbr.rel (0) target = $region41
    $region40: #{tpu_custom_call.1} parent=1 // pred_region
      %78 = dma.done [#allocation10], 1024
    $region41: #{tpu_custom_call.1} parent=1 // pred_fallthru
      _
    %v80 = vld [vmem:[#allocation3] sm:$0xf]
    %v81 = vld [vmem:[#allocation3 + $0x4] sm:$0xf]
    %v82 = vld [vmem:[#allocation3 + $0x8] sm:$0xf]
    %v83 = vld [vmem:[#allocation3 + $0xc] sm:$0xf]
    %v84 = vld [vmem:[#allocation3 + $0x10] sm:$0xf]
    %v85 = vld [vmem:[#allocation3 + $0x14] sm:$0xf]
    %v86 = vld [vmem:[#allocation3 + $0x18] sm:$0xf]
    %v87 = vld [vmem:[#allocation3 + $0x1c] sm:$0xf]
    %v88 = vld [vmem:[#allocation6] sm:$0xf]
    %v89 = vld [vmem:[#allocation6 + $0x4] sm:$0xf]
    %v90 = vld [vmem:[#allocation6 + $0x8] sm:$0xf]
    %v91 = vld [vmem:[#allocation6 + $0xc] sm:$0xf]
    %v92 = vld [vmem:[#allocation6 + $0x10] sm:$0xf]
    %v93 = vld [vmem:[#allocation6 + $0x14] sm:$0xf]
    %v94 = vld [vmem:[#allocation6 + $0x18] sm:$0xf]
    %v95 = vld [vmem:[#allocation6 + $0x1c] sm:$0xf]
    %v96 = vld [vmem:[#allocation6 + $0x20] sm:$0xf]
    %v97 = vld [vmem:[#allocation6 + $0x24] sm:$0xf]
    %v98 = vld [vmem:[#allocation6 + $0x28] sm:$0xf]
    %v99 = vld [vmem:[#allocation6 + $0x2c] sm:$0xf]
    %v100 = vld [vmem:[#allocation6 + $0x30] sm:$0xf]
    %v101 = vld [vmem:[#allocation6 + $0x34] sm:$0xf]
    %v102 = vld [vmem:[#allocation6 + $0x38] sm:$0xf]
    %v103 = vld [vmem:[#allocation6 + $0x3c] sm:$0xf]
    %v104 = vld [vmem:[%s3] sm:$0x1]
    %v106 = vlaneseq
    %v107 = vshrl.u32 %v106, 7
    %v108 = vsub.s32 0, %v107
    %v109 = vrot.slane %v104, %v108
    %v119 = vunpack.c.l.b16 %v80
    %v120 = vunpack.c.l.b16 %v81
    %v121 = vunpack.c.l.b16 %v82
    %v122 = vunpack.c.l.b16 %v83
    %v123 = vunpack.c.l.b16 %v84
    %v124 = vunpack.c.l.b16 %v85
    %v125 = vunpack.c.l.b16 %v86
    %v126 = vunpack.c.l.b16 %v87
    %v127 = vpack.c.b16 %v120, %v119
    %v128 = vpack.c.b16 %v122, %v121
    %v129 = vpack.c.b16 %v124, %v123
    %v130 = vpack.c.b16 %v126, %v125
    %v151 = vunpack.c.l.b16 %v88
    %v152 = vunpack.c.l.b16 %v89
    %v153 = vunpack.c.l.b16 %v90
    %v154 = vunpack.c.l.b16 %v91
    %v155 = vunpack.c.l.b16 %v92
    %v156 = vunpack.c.l.b16 %v93
    %v157 = vunpack.c.l.b16 %v94
    %v158 = vunpack.c.l.b16 %v95
    %v159 = vunpack.c.l.b16 %v96
    %v160 = vunpack.c.l.b16 %v97
    %v161 = vunpack.c.l.b16 %v98
    %v162 = vunpack.c.l.b16 %v99
    %v163 = vunpack.c.l.b16 %v100
    %v164 = vunpack.c.l.b16 %v101
    %v165 = vunpack.c.l.b16 %v102
    %v166 = vunpack.c.l.b16 %v103
    %v167 = vpack.c.b16 %v152, %v151
    %v168 = vpack.c.b16 %v154, %v153
    %v169 = vpack.c.b16 %v156, %v155
    %v170 = vpack.c.b16 %v158, %v157
    %v171 = vpack.c.b16 %v160, %v159
    %v172 = vpack.c.b16 %v162, %v161
    %v173 = vpack.c.b16 %v164, %v163
    %v174 = vpack.c.b16 %v166, %v165
    %183 = vmatprep.subr.bf16.mxu0 0
    %184 = vmatpush1.bf16.msra.mxu0 %v174
    %185 = vmatprep.subr.bf16.mxu0 0
    %186 = vmatpush1.bf16.msra.mxu0 %v173
    %187 = vmatprep.subr.bf16.mxu0 0
    %188 = vmatpush1.bf16.msra.mxu0 %v172
    %189 = vmatprep.subr.bf16.mxu0 0
    %190 = vmatpush1.bf16.msra.mxu0 %v171
    %191 = vmatprep.subr.bf16.mxu0 0
    %192 = vmatpush1.bf16.msra.mxu0 %v170
    %193 = vmatprep.subr.bf16.mxu0 0
    %194 = vmatpush1.bf16.msra.mxu0 %v169
    %195 = vmatprep.subr.bf16.mxu0 0
    %196 = vmatpush1.bf16.msra.mxu0 %v168
    %197 = vmatprep.subr.bf16.mxu0 0
    %198 = vmatpush1.bf16.msra.mxu0 %v167
    %199 = vmatprep.subr.bf16.mxu0 0
    %200 = vmatpush2.bf16.msra.mxu0 0
    %201 = vmatprep.subr.bf16.mxu0 0
    %202 = vmatpush2.bf16.msra.mxu0 0
    %203 = vmatprep.subr.bf16.mxu0 0
    %204 = vmatpush2.bf16.msra.mxu0 0
    %205 = vmatprep.subr.bf16.mxu0 0
    %206 = vmatpush2.bf16.msra.mxu0 0
    %207 = vmatprep.subr.bf16.mxu0 0
    %208 = vmatpush2.bf16.msra.mxu0 0
    %209 = vmatprep.subr.bf16.mxu0 0
    %210 = vmatpush2.bf16.msra.mxu0 0
    %211 = vmatprep.subr.bf16.mxu0 0
    %212 = vmatpush2.bf16.msra.mxu0 0
    %213 = vmatprep.subr.bf16.mxu0 0
    %214 = vmatpush2.bf16.msra.mxu0 0
    %215 = vmatprep.mubr.bf16.mxu0 0
    %216 = vmatmul.mubr.bf16.gmra.mxu0 %v127
    %v217 = vpop.f32.mrf.mxu0
    %v218 = vadd.f32 %v109, %v217
    %v219 = vpop.f32.mrf.mxu0
    %v220 = vpop.f32.mrf.mxu0
    %v221 = vadd.f32 %v109, %v220
    %v222 = vpop.f32.mrf.mxu0
    %223 = vmatprep.mubr.bf16.mxu0 0
    %224 = vmatmul.mubr.bf16.gmra.mxu0 %v128
    %v225 = vpop.f32.mrf.mxu0
    %v226 = vadd.f32 %v109, %v225
    %v227 = vpop.f32.mrf.mxu0
    %v228 = vpop.f32.mrf.mxu0
    %v229 = vadd.f32 %v109, %v228
    %v230 = vpop.f32.mrf.mxu0
    %231 = vmatprep.mubr.bf16.mxu0 0
    %232 = vmatmul.mubr.bf16.gmra.mxu0 %v129
    %v233 = vpop.f32.mrf.mxu0
    %v234 = vadd.f32 %v109, %v233
    %v235 = vpop.f32.mrf.mxu0
    %v236 = vpop.f32.mrf.mxu0
    %v237 = vadd.f32 %v109, %v236
    %v238 = vpop.f32.mrf.mxu0
    %239 = vmatprep.mubr.bf16.mxu0 0
    %240 = vmatmul.mubr.bf16.gmra.mxu0 %v130
    %v241 = vpop.f32.mrf.mxu0
    %v242 = vadd.f32 %v109, %v241
    %v243 = vpop.f32.mrf.mxu0
    %v244 = vpop.f32.mrf.mxu0
    %v245 = vadd.f32 %v109, %v244
    %v246 = vpop.f32.mrf.mxu0
    %247 = vdwg.mxu0
    %248 = vst [vmem:[#allocation2] sm:$0xff] %v218
    %249 = vst [vmem:[#allocation2 + $0x8] sm:$0xff] %v221
    %250 = vst [vmem:[#allocation2 + $0x10] sm:$0xff] %v226
    %251 = vst [vmem:[#allocation2 + $0x18] sm:$0xff] %v229
    %252 = vst [vmem:[#allocation2 + $0x20] sm:$0xff] %v234
    %253 = vst [vmem:[#allocation2 + $0x28] sm:$0xff] %v237
    %254 = vst [vmem:[#allocation2 + $0x30] sm:$0xff] %v242
    %255 = vst [vmem:[#allocation2 + $0x38] sm:$0xff] %v245
    %v256 = vld [vmem:[#allocation8] sm:$0xf]
    %v257 = vld [vmem:[#allocation8 + $0x4] sm:$0xf]
    %v258 = vld [vmem:[#allocation8 + $0x8] sm:$0xf]
    %v259 = vld [vmem:[#allocation8 + $0xc] sm:$0xf]
    %v260 = vld [vmem:[#allocation8 + $0x10] sm:$0xf]
    %v261 = vld [vmem:[#allocation8 + $0x14] sm:$0xf]
    %v262 = vld [vmem:[#allocation8 + $0x18] sm:$0xf]
    %v263 = vld [vmem:[#allocation8 + $0x1c] sm:$0xf]
    %v264 = vld [vmem:[#allocation8 + $0x20] sm:$0xf]
    %v265 = vld [vmem:[#allocation8 + $0x24] sm:$0xf]
    %v266 = vld [vmem:[#allocation8 + $0x28] sm:$0xf]
    %v267 = vld [vmem:[#allocation8 + $0x2c] sm:$0xf]
    %v268 = vld [vmem:[#allocation8 + $0x30] sm:$0xf]
    %v269 = vld [vmem:[#allocation8 + $0x34] sm:$0xf]
    %v270 = vld [vmem:[#allocation8 + $0x38] sm:$0xf]
    %v271 = vld [vmem:[#allocation8 + $0x3c] sm:$0xf]
    %v272 = vld [vmem:[#allocation2] sm:$0xff]
    %v273 = vtanh.pop %v272
    %v274 = vld [vmem:[#allocation2 + $0x8] sm:$0xff]
    %v275 = vpack.c.bf16 %v273, %v273
    %v292 = vunpack.c.l.b16 %v256
    %v293 = vunpack.c.l.b16 %v257
    %v294 = vunpack.c.l.b16 %v258
    %v295 = vunpack.c.l.b16 %v259
    %v296 = vunpack.c.l.b16 %v260
    %v297 = vunpack.c.l.b16 %v261
    %v298 = vunpack.c.l.b16 %v262
    %v299 = vunpack.c.l.b16 %v263
    %v300 = vunpack.c.l.b16 %v264
    %v301 = vunpack.c.l.b16 %v265
    %v302 = vunpack.c.l.b16 %v266
    %v303 = vunpack.c.l.b16 %v267
    %v304 = vunpack.c.l.b16 %v268
    %v305 = vunpack.c.l.b16 %v269
    %v306 = vunpack.c.l.b16 %v270
    %v307 = vunpack.c.l.b16 %v271
    %v308 = vpack.c.b16 %v293, %v292
    %v309 = vpack.c.b16 %v295, %v294
    %v310 = vpack.c.b16 %v297, %v296
    %v311 = vpack.c.b16 %v299, %v298
    %v312 = vpack.c.b16 %v301, %v300
    %v313 = vpack.c.b16 %v303, %v302
    %v314 = vpack.c.b16 %v305, %v304
    %v315 = vpack.c.b16 %v307, %v306
    %324 = vmatprep.subr.bf16.mxu0 0
    %325 = vmatpush1.bf16.msra.mxu0 %v315
    %326 = vmatprep.subr.bf16.mxu0 0
    %327 = vmatpush1.bf16.msra.mxu0 %v314
    %328 = vmatprep.subr.bf16.mxu0 0
    %329 = vmatpush1.bf16.msra.mxu0 %v313
    %330 = vmatprep.subr.bf16.mxu0 0
    %331 = vmatpush1.bf16.msra.mxu0 %v312
    %332 = vmatprep.subr.bf16.mxu0 0
    %333 = vmatpush1.bf16.msra.mxu0 %v311
    %334 = vmatprep.subr.bf16.mxu0 0
    %335 = vmatpush1.bf16.msra.mxu0 %v310
    %336 = vmatprep.subr.bf16.mxu0 0
    %337 = vmatpush1.bf16.msra.mxu0 %v309
    %338 = vmatprep.subr.bf16.mxu0 0
    %339 = vmatpush1.bf16.msra.mxu0 %v308
    %340 = vmatprep.subr.bf16.mxu0 0
    %341 = vmatpush2.bf16.msra.mxu0 0
    %342 = vmatprep.subr.bf16.mxu0 0
    %343 = vmatpush2.bf16.msra.mxu0 0
    %344 = vmatprep.subr.bf16.mxu0 0
    %345 = vmatpush2.bf16.msra.mxu0 0
    %346 = vmatprep.subr.bf16.mxu0 0
    %347 = vmatpush2.bf16.msra.mxu0 0
    %348 = vmatprep.subr.bf16.mxu0 0
    %349 = vmatpush2.bf16.msra.mxu0 0
    %350 = vmatprep.subr.bf16.mxu0 0
    %351 = vmatpush2.bf16.msra.mxu0 0
    %352 = vmatprep.subr.bf16.mxu0 0
    %353 = vmatpush2.bf16.msra.mxu0 0
    %354 = vmatprep.subr.bf16.mxu0 0
    %355 = vmatpush2.bf16.msra.mxu0 0
    %356 = vmatprep.mubr.bf16.mxu0 0
    %357 = vmatmul.mubr.bf16.gmra.mxu0 %v275
    %v358 = vpop.f32.mrf.mxu0
    %v359 = vadd.f32 0.0, %v358
    %v360 = vpop.f32.mrf.mxu0
    %v361 = vpop.f32.mrf.mxu0
    %v362 = vpop.f32.mrf.mxu0
    %363 = vdwg.mxu0
    %v364 = vadd.f32 %v274, %v359
    %v365 = vtanh.pop %v364
    %v366 = vld [vmem:[#allocation2 + $0x10] sm:$0xff]
    %v367 = vpack.c.bf16 %v365, %v365
    %368 = vmatprep.subr.bf16.mxu0 0
    %369 = vmatpush1.bf16.msra.mxu0 %v315
    %370 = vmatprep.subr.bf16.mxu0 0
    %371 = vmatpush1.bf16.msra.mxu0 %v314
    %372 = vmatprep.subr.bf16.mxu0 0
    %373 = vmatpush1.bf16.msra.mxu0 %v313
    %374 = vmatprep.subr.bf16.mxu0 0
    %375 = vmatpush1.bf16.msra.mxu0 %v312
    %376 = vmatprep.subr.bf16.mxu0 0
    %377 = vmatpush1.bf16.msra.mxu0 %v311
    %378 = vmatprep.subr.bf16.mxu0 0
    %379 = vmatpush1.bf16.msra.mxu0 %v310
    %380 = vmatprep.subr.bf16.mxu0 0
    %381 = vmatpush1.bf16.msra.mxu0 %v309
    %382 = vmatprep.subr.bf16.mxu0 0
    %383 = vmatpush1.bf16.msra.mxu0 %v308
    %384 = vmatprep.subr.bf16.mxu0 0
    %385 = vmatpush2.bf16.msra.mxu0 0
    %386 = vmatprep.subr.bf16.mxu0 0
    %387 = vmatpush2.bf16.msra.mxu0 0
    %388 = vmatprep.subr.bf16.mxu0 0
    %389 = vmatpush2.bf16.msra.mxu0 0
    %390 = vmatprep.subr.bf16.mxu0 0
    %391 = vmatpush2.bf16.msra.mxu0 0
    %392 = vmatprep.subr.bf16.mxu0 0
    %393 = vmatpush2.bf16.msra.mxu0 0
    %394 = vmatprep.subr.bf16.mxu0 0
    %395 = vmatpush2.bf16.msra.mxu0 0
    %396 = vmatprep.subr.bf16.mxu0 0
    %397 = vmatpush2.bf16.msra.mxu0 0
    %398 = vmatprep.subr.bf16.mxu0 0
    %399 = vmatpush2.bf16.msra.mxu0 0
    %400 = vmatprep.mubr.bf16.mxu0 0
    %401 = vmatmul.mubr.bf16.gmra.mxu0 %v367
    %v402 = vpop.f32.mrf.mxu0
    %v403 = vadd.f32 0.0, %v402
    %v404 = vpop.f32.mrf.mxu0
    %v405 = vpop.f32.mrf.mxu0
    %v406 = vpop.f32.mrf.mxu0
    %407 = vdwg.mxu0
    %v408 = vadd.f32 %v366, %v403
    %v409 = vtanh.pop %v408
    %v410 = vld [vmem:[#allocation2 + $0x18] sm:$0xff]
    %v411 = vpack.c.bf16 %v409, %v409
    %412 = vmatprep.subr.bf16.mxu0 0
    %413 = vmatpush1.bf16.msra.mxu0 %v315
    %414 = vmatprep.subr.bf16.mxu0 0
    %415 = vmatpush1.bf16.msra.mxu0 %v314
    %416 = vmatprep.subr.bf16.mxu0 0
    %417 = vmatpush1.bf16.msra.mxu0 %v313
    %418 = vmatprep.subr.bf16.mxu0 0
    %419 = vmatpush1.bf16.msra.mxu0 %v312
    %420 = vmatprep.subr.bf16.mxu0 0
    %421 = vmatpush1.bf16.msra.mxu0 %v311
    %422 = vmatprep.subr.bf16.mxu0 0
    %423 = vmatpush1.bf16.msra.mxu0 %v310
    %424 = vmatprep.subr.bf16.mxu0 0
    %425 = vmatpush1.bf16.msra.mxu0 %v309
    %426 = vmatprep.subr.bf16.mxu0 0
    %427 = vmatpush1.bf16.msra.mxu0 %v308
    %428 = vmatprep.subr.bf16.mxu0 0
    %429 = vmatpush2.bf16.msra.mxu0 0
    %430 = vmatprep.subr.bf16.mxu0 0
    %431 = vmatpush2.bf16.msra.mxu0 0
    %432 = vmatprep.subr.bf16.mxu0 0
    %433 = vmatpush2.bf16.msra.mxu0 0
    %434 = vmatprep.subr.bf16.mxu0 0
    %435 = vmatpush2.bf16.msra.mxu0 0
    %436 = vmatprep.subr.bf16.mxu0 0
    %437 = vmatpush2.bf16.msra.mxu0 0
    %438 = vmatprep.subr.bf16.mxu0 0
    %439 = vmatpush2.bf16.msra.mxu0 0
    %440 = vmatprep.subr.bf16.mxu0 0
    %441 = vmatpush2.bf16.msra.mxu0 0
    %442 = vmatprep.subr.bf16.mxu0 0
    %443 = vmatpush2.bf16.msra.mxu0 0
    %444 = vmatprep.mubr.bf16.mxu0 0
    %445 = vmatmul.mubr.bf16.gmra.mxu0 %v411
    %v446 = vpop.f32.mrf.mxu0
    %v447 = vadd.f32 0.0, %v446
    %v448 = vpop.f32.mrf.mxu0
    %v449 = vpop.f32.mrf.mxu0
    %v450 = vpop.f32.mrf.mxu0
    %451 = vdwg.mxu0
    %v452 = vadd.f32 %v410, %v447
    %v453 = vtanh.pop %v452
    %v454 = vld [vmem:[#allocation2 + $0x20] sm:$0xff]
    %v455 = vpack.c.bf16 %v453, %v453
    %456 = vmatprep.subr.bf16.mxu0 0
    %457 = vmatpush1.bf16.msra.mxu0 %v315
    %458 = vmatprep.subr.bf16.mxu0 0
    %459 = vmatpush1.bf16.msra.mxu0 %v314
    %460 = vmatprep.subr.bf16.mxu0 0
    %461 = vmatpush1.bf16.msra.mxu0 %v313
    %462 = vmatprep.subr.bf16.mxu0 0
    %463 = vmatpush1.bf16.msra.mxu0 %v312
    %464 = vmatprep.subr.bf16.mxu0 0
    %465 = vmatpush1.bf16.msra.mxu0 %v311
    %466 = vmatprep.subr.bf16.mxu0 0
    %467 = vmatpush1.bf16.msra.mxu0 %v310
    %468 = vmatprep.subr.bf16.mxu0 0
    %469 = vmatpush1.bf16.msra.mxu0 %v309
    %470 = vmatprep.subr.bf16.mxu0 0
    %471 = vmatpush1.bf16.msra.mxu0 %v308
    %472 = vmatprep.subr.bf16.mxu0 0
    %473 = vmatpush2.bf16.msra.mxu0 0
    %474 = vmatprep.subr.bf16.mxu0 0
    %475 = vmatpush2.bf16.msra.mxu0 0
    %476 = vmatprep.subr.bf16.mxu0 0
    %477 = vmatpush2.bf16.msra.mxu0 0
    %478 = vmatprep.subr.bf16.mxu0 0
    %479 = vmatpush2.bf16.msra.mxu0 0
    %480 = vmatprep.subr.bf16.mxu0 0
    %481 = vmatpush2.bf16.msra.mxu0 0
    %482 = vmatprep.subr.bf16.mxu0 0
    %483 = vmatpush2.bf16.msra.mxu0 0
    %484 = vmatprep.subr.bf16.mxu0 0
    %485 = vmatpush2.bf16.msra.mxu0 0
    %486 = vmatprep.subr.bf16.mxu0 0
    %487 = vmatpush2.bf16.msra.mxu0 0
    %488 = vmatprep.mubr.bf16.mxu0 0
    %489 = vmatmul.mubr.bf16.gmra.mxu0 %v455
    %v490 = vpop.f32.mrf.mxu0
    %v491 = vadd.f32 0.0, %v490
    %v492 = vpop.f32.mrf.mxu0
    %v493 = vpop.f32.mrf.mxu0
    %v494 = vpop.f32.mrf.mxu0
    %495 = vdwg.mxu0
    %v496 = vadd.f32 %v454, %v491
    %v497 = vtanh.pop %v496
    %v498 = vld [vmem:[#allocation2 + $0x28] sm:$0xff]
    %v499 = vpack.c.bf16 %v497, %v497
    %500 = vmatprep.subr.bf16.mxu0 0
    %501 = vmatpush1.bf16.msra.mxu0 %v315
    %502 = vmatprep.subr.bf16.mxu0 0
    %503 = vmatpush1.bf16.msra.mxu0 %v314
    %504 = vmatprep.subr.bf16.mxu0 0
    %505 = vmatpush1.bf16.msra.mxu0 %v313
    %506 = vmatprep.subr.bf16.mxu0 0
    %507 = vmatpush1.bf16.msra.mxu0 %v312
    %508 = vmatprep.subr.bf16.mxu0 0
    %509 = vmatpush1.bf16.msra.mxu0 %v311
    %510 = vmatprep.subr.bf16.mxu0 0
    %511 = vmatpush1.bf16.msra.mxu0 %v310
    %512 = vmatprep.subr.bf16.mxu0 0
    %513 = vmatpush1.bf16.msra.mxu0 %v309
    %514 = vmatprep.subr.bf16.mxu0 0
    %515 = vmatpush1.bf16.msra.mxu0 %v308
    %516 = vmatprep.subr.bf16.mxu0 0
    %517 = vmatpush2.bf16.msra.mxu0 0
    %518 = vmatprep.subr.bf16.mxu0 0
    %519 = vmatpush2.bf16.msra.mxu0 0
    %520 = vmatprep.subr.bf16.mxu0 0
    %521 = vmatpush2.bf16.msra.mxu0 0
    %522 = vmatprep.subr.bf16.mxu0 0
    %523 = vmatpush2.bf16.msra.mxu0 0
    %524 = vmatprep.subr.bf16.mxu0 0
    %525 = vmatpush2.bf16.msra.mxu0 0
    %526 = vmatprep.subr.bf16.mxu0 0
    %527 = vmatpush2.bf16.msra.mxu0 0
    %528 = vmatprep.subr.bf16.mxu0 0
    %529 = vmatpush2.bf16.msra.mxu0 0
    %530 = vmatprep.subr.bf16.mxu0 0
    %531 = vmatpush2.bf16.msra.mxu0 0
    %532 = vmatprep.mubr.bf16.mxu0 0
    %533 = vmatmul.mubr.bf16.gmra.mxu0 %v499
    %v534 = vpop.f32.mrf.mxu0
    %v535 = vadd.f32 0.0, %v534
    %v536 = vpop.f32.mrf.mxu0
    %v537 = vpop.f32.mrf.mxu0
    %v538 = vpop.f32.mrf.mxu0
    %539 = vdwg.mxu0
    %v540 = vadd.f32 %v498, %v535
    %v541 = vtanh.pop %v540
    %v542 = vld [vmem:[#allocation2 + $0x30] sm:$0xff]
    %v543 = vpack.c.bf16 %v541, %v541
    %544 = vmatprep.subr.bf16.mxu0 0
    %545 = vmatpush1.bf16.msra.mxu0 %v315
    %546 = vmatprep.subr.bf16.mxu0 0
    %547 = vmatpush1.bf16.msra.mxu0 %v314
    %548 = vmatprep.subr.bf16.mxu0 0
    %549 = vmatpush1.bf16.msra.mxu0 %v313
    %550 = vmatprep.subr.bf16.mxu0 0
    %551 = vmatpush1.bf16.msra.mxu0 %v312
    %552 = vmatprep.subr.bf16.mxu0 0
    %553 = vmatpush1.bf16.msra.mxu0 %v311
    %554 = vmatprep.subr.bf16.mxu0 0
    %555 = vmatpush1.bf16.msra.mxu0 %v310
    %556 = vmatprep.subr.bf16.mxu0 0
    %557 = vmatpush1.bf16.msra.mxu0 %v309
    %558 = vmatprep.subr.bf16.mxu0 0
    %559 = vmatpush1.bf16.msra.mxu0 %v308
    %560 = vmatprep.subr.bf16.mxu0 0
    %561 = vmatpush2.bf16.msra.mxu0 0
    %562 = vmatprep.subr.bf16.mxu0 0
    %563 = vmatpush2.bf16.msra.mxu0 0
    %564 = vmatprep.subr.bf16.mxu0 0
    %565 = vmatpush2.bf16.msra.mxu0 0
    %566 = vmatprep.subr.bf16.mxu0 0
    %567 = vmatpush2.bf16.msra.mxu0 0
    %568 = vmatprep.subr.bf16.mxu0 0
    %569 = vmatpush2.bf16.msra.mxu0 0
    %570 = vmatprep.subr.bf16.mxu0 0
    %571 = vmatpush2.bf16.msra.mxu0 0
    %572 = vmatprep.subr.bf16.mxu0 0
    %573 = vmatpush2.bf16.msra.mxu0 0
    %574 = vmatprep.subr.bf16.mxu0 0
    %575 = vmatpush2.bf16.msra.mxu0 0
    %576 = vmatprep.mubr.bf16.mxu0 0
    %577 = vmatmul.mubr.bf16.gmra.mxu0 %v543
    %v578 = vpop.f32.mrf.mxu0
    %v579 = vadd.f32 0.0, %v578
    %v580 = vpop.f32.mrf.mxu0
    %v581 = vpop.f32.mrf.mxu0
    %v582 = vpop.f32.mrf.mxu0
    %583 = vdwg.mxu0
    %v584 = vadd.f32 %v542, %v579
    %v585 = vtanh.pop %v584
    %v586 = vld [vmem:[#allocation2 + $0x38] sm:$0xff]
    %v587 = vpack.c.bf16 %v585, %v585
    %588 = vmatprep.subr.bf16.mxu0 0
    %589 = vmatpush1.bf16.msra.mxu0 %v315
    %590 = vmatprep.subr.bf16.mxu0 0
    %591 = vmatpush1.bf16.msra.mxu0 %v314
    %592 = vmatprep.subr.bf16.mxu0 0
    %593 = vmatpush1.bf16.msra.mxu0 %v313
    %594 = vmatprep.subr.bf16.mxu0 0
    %595 = vmatpush1.bf16.msra.mxu0 %v312
    %596 = vmatprep.subr.bf16.mxu0 0
    %597 = vmatpush1.bf16.msra.mxu0 %v311
    %598 = vmatprep.subr.bf16.mxu0 0
    %599 = vmatpush1.bf16.msra.mxu0 %v310
    %600 = vmatprep.subr.bf16.mxu0 0
    %601 = vmatpush1.bf16.msra.mxu0 %v309
    %602 = vmatprep.subr.bf16.mxu0 0
    %603 = vmatpush1.bf16.msra.mxu0 %v308
    %604 = vmatprep.subr.bf16.mxu0 0
    %605 = vmatpush2.bf16.msra.mxu0 0
    %606 = vmatprep.subr.bf16.mxu0 0
    %607 = vmatpush2.bf16.msra.mxu0 0
    %608 = vmatprep.subr.bf16.mxu0 0
    %609 = vmatpush2.bf16.msra.mxu0 0
    %610 = vmatprep.subr.bf16.mxu0 0
    %611 = vmatpush2.bf16.msra.mxu0 0
    %612 = vmatprep.subr.bf16.mxu0 0
    %613 = vmatpush2.bf16.msra.mxu0 0
    %614 = vmatprep.subr.bf16.mxu0 0
    %615 = vmatpush2.bf16.msra.mxu0 0
    %616 = vmatprep.subr.bf16.mxu0 0
    %617 = vmatpush2.bf16.msra.mxu0 0
    %618 = vmatprep.subr.bf16.mxu0 0
    %619 = vmatpush2.bf16.msra.mxu0 0
    %620 = vmatprep.mubr.bf16.mxu0 0
    %621 = vmatmul.mubr.bf16.gmra.mxu0 %v587
    %v622 = vpop.f32.mrf.mxu0
    %v623 = vadd.f32 0.0, %v622
    %v624 = vpop.f32.mrf.mxu0
    %v625 = vpop.f32.mrf.mxu0
    %v626 = vpop.f32.mrf.mxu0
    %627 = vdwg.mxu0
    %v628 = vadd.f32 %v586, %v623
    %v629 = vtanh.pop %v628
    %v630 = vpack.c.bf16 %v629, %v629
    %v631 = vld [vmem:[#allocation9] sm:$0xf]
    %v632 = vld [vmem:[#allocation9 + $0x4] sm:$0xf]
    %v633 = vld [vmem:[#allocation9 + $0x8] sm:$0xf]
    %v634 = vld [vmem:[#allocation9 + $0xc] sm:$0xf]
    %v635 = vld [vmem:[#allocation9 + $0x10] sm:$0xf]
    %v636 = vld [vmem:[#allocation9 + $0x14] sm:$0xf]
    %v637 = vld [vmem:[#allocation9 + $0x18] sm:$0xf]
    %v638 = vld [vmem:[#allocation9 + $0x1c] sm:$0xf]
    %v639 = vld [vmem:[#allocation9 + $0x20] sm:$0xf]
    %v640 = vld [vmem:[#allocation9 + $0x24] sm:$0xf]
    %v641 = vld [vmem:[#allocation9 + $0x28] sm:$0xf]
    %v642 = vld [vmem:[#allocation9 + $0x2c] sm:$0xf]
    %v643 = vld [vmem:[#allocation9 + $0x30] sm:$0xf]
    %v644 = vld [vmem:[#allocation9 + $0x34] sm:$0xf]
    %v645 = vld [vmem:[#allocation9 + $0x38] sm:$0xf]
    %v646 = vld [vmem:[#allocation9 + $0x3c] sm:$0xf]
    %v647 = vld [vmem:[%s5] sm:$0x1]
    %v649 = vlaneseq
    %v650 = vshrl.u32 %v649, 7
    %v651 = vsub.s32 0, %v650
    %v652 = vrot.slane %v647, %v651
    %v670 = vunpack.c.l.b16 %v631
    %v671 = vunpack.c.l.b16 %v632
    %v672 = vunpack.c.l.b16 %v633
    %v673 = vunpack.c.l.b16 %v634
    %v674 = vunpack.c.l.b16 %v635
    %v675 = vunpack.c.l.b16 %v636
    %v676 = vunpack.c.l.b16 %v637
    %v677 = vunpack.c.l.b16 %v638
    %v678 = vunpack.c.l.b16 %v639
    %v679 = vunpack.c.l.b16 %v640
    %v680 = vunpack.c.l.b16 %v641
    %v681 = vunpack.c.l.b16 %v642
    %v682 = vunpack.c.l.b16 %v643
    %v683 = vunpack.c.l.b16 %v644
    %v684 = vunpack.c.l.b16 %v645
    %v685 = vunpack.c.l.b16 %v646
    %v686 = vpack.c.b16 %v671, %v670
    %v687 = vpack.c.b16 %v673, %v672
    %v688 = vpack.c.b16 %v675, %v674
    %v689 = vpack.c.b16 %v677, %v676
    %v690 = vpack.c.b16 %v679, %v678
    %v691 = vpack.c.b16 %v681, %v680
    %v692 = vpack.c.b16 %v683, %v682
    %v693 = vpack.c.b16 %v685, %v684
    %702 = vmatprep.subr.bf16.mxu0 0
    %703 = vmatpush1.bf16.msra.mxu0 %v693
    %704 = vmatprep.subr.bf16.mxu0 0
    %705 = vmatpush1.bf16.msra.mxu0 %v692
    %706 = vmatprep.subr.bf16.mxu0 0
    %707 = vmatpush1.bf16.msra.mxu0 %v691
    %708 = vmatprep.subr.bf16.mxu0 0
    %709 = vmatpush1.bf16.msra.mxu0 %v690
    %710 = vmatprep.subr.bf16.mxu0 0
    %711 = vmatpush1.bf16.msra.mxu0 %v689
    %712 = vmatprep.subr.bf16.mxu0 0
    %713 = vmatpush1.bf16.msra.mxu0 %v688
    %714 = vmatprep.subr.bf16.mxu0 0
    %715 = vmatpush1.bf16.msra.mxu0 %v687
    %716 = vmatprep.subr.bf16.mxu0 0
    %717 = vmatpush1.bf16.msra.mxu0 %v686
    %718 = vmatprep.subr.bf16.mxu0 0
    %719 = vmatpush2.bf16.msra.mxu0 0
    %720 = vmatprep.subr.bf16.mxu0 0
    %721 = vmatpush2.bf16.msra.mxu0 0
    %722 = vmatprep.subr.bf16.mxu0 0
    %723 = vmatpush2.bf16.msra.mxu0 0
    %724 = vmatprep.subr.bf16.mxu0 0
    %725 = vmatpush2.bf16.msra.mxu0 0
    %726 = vmatprep.subr.bf16.mxu0 0
    %727 = vmatpush2.bf16.msra.mxu0 0
    %728 = vmatprep.subr.bf16.mxu0 0
    %729 = vmatpush2.bf16.msra.mxu0 0
    %730 = vmatprep.subr.bf16.mxu0 0
    %731 = vmatpush2.bf16.msra.mxu0 0
    %732 = vmatprep.subr.bf16.mxu0 0
    %733 = vmatpush2.bf16.msra.mxu0 0
    %734 = vmatprep.mubr.bf16.mxu0 0
    %735 = vmatmul.mubr.bf16.gmra.mxu0 %v630
    %v736 = vpop.f32.mrf.mxu0
    %v737 = vadd.f32 %v652, %v736
    %v738 = vpop.f32.mrf.mxu0
    %v739 = vpop.f32.mrf.mxu0
    %v740 = vpop.f32.mrf.mxu0
    %741 = vdwg.mxu0
    %v742 = vtanh.pop %v737
    %743 = vst [vmem:[#allocation11] sm:$0xff] %v742
    // Predicated region
    $region42: #{tpu_custom_call.1} parent=1 // pred_check
      _
    $region43: #{tpu_custom_call.1} parent=1 // pred_check_branch
      %745 = sbr.rel (0) target = $region45
    $region44: #{tpu_custom_call.1} parent=1 // pred_region
      %s747 = ssub.s32 128, 128
      %748 = vsyncadd [#allocation5], %s747
      %s750 = sshll.u32 [#allocation11], 4
      %s751 = int_to_ptr.vmem [resolvable:$true] %s750
      %753 = dma.vmem_to_hbm [thread:$0]  %s751, 128, %s6, [#allocation5]
    $region45: #{tpu_custom_call.1} parent=1 // pred_fallthru
      _
    // Predicated region
    $region46: #{tpu_custom_call.1} parent=1 // pred_check
      _
    $region47: #{tpu_custom_call.1} parent=1 // pred_check_branch
      %755 = sbr.rel (0) target = $region49
    $region48: #{tpu_custom_call.1} parent=1 // pred_region
      %756 = dma.done [#allocation5], 128
    $region49: #{tpu_custom_call.1} parent=1 // pred_fallthru
      _
    %757 = vsyncpa [#allocation4], 1
    %758 = vsyncpa [#allocation7], 1
    %759 = vsyncpa [#allocation10], 1
    %760 = vsyncpa [#allocation5], 1

</llo_original>
